<compile_context>
chip_gen: v5e
topology: v5e:2x2
jax: 0.10.0
libtpu: 0.0.40
codegen_flags: <defaults>
</compile_context>

<pallas_src>
import functools

import numpy as np
import jax
import jax.numpy as jnp
from jax.experimental import pallas as pl
from jax.experimental.pallas import tpu as pltpu


# ------------------------------ Pallas kernel -------------------------------

def _unet_encoder_kernel(x_ref, mask_ref, w1_ref, b1_ref, w2_ref, b2_ref, o_ref):
    """Fused conv1 -> relu -> mask -> conv2 -> relu on one batch block.

    x_ref   : (1, Cin,  Lanes)   Lanes = Bt*Lp, Lp % 128 == 0, Lp >= L+1
    mask_ref: (1, Lanes)         1.0 on valid per-sample positions, 0.0 on pad
    w1_ref  : (Cout, 3*Cin)      stacked per-tap weights (tap-major rows)
    b1_ref  : (Cout, 1)
    w2_ref  : (Cout, 3*Cout)
    b2_ref  : (Cout, 1)
    o_ref   : (1, Cout, Lanes)
    """
    x = x_ref[0]                                   # (Cin, Lanes)
    mask = mask_ref[...]                           # (1, Lanes)
    lanes = x.shape[-1]

    def conv3_relu(xin, w_ref, b_ref):
        # Lp >= L+1 guarantees every sample ends in >=1 zero lane, so the
        # lanes wrapped in by the rolls are either zero already (x_prev) or
        # only feed masked/discarded tail outputs (x_next): no wrap masks.
        x_prev = pltpu.roll(xin, shift=1, axis=1)            # x[l-1]
        x_next = pltpu.roll(xin, shift=lanes - 1, axis=1)    # x[l+1]
        rhs = jnp.concatenate([x_prev, xin, x_next], axis=0)  # (3*C, Lanes)
        y = jnp.dot(w_ref[...], rhs, preferred_element_type=jnp.float32)
        return jnp.maximum(y + b_ref[...], 0.0)

    h = conv3_relu(x, w1_ref, b1_ref) * mask       # zero per-sample pad tail
    y = conv3_relu(h, w2_ref, b2_ref)
    o_ref[0] = y.astype(o_ref.dtype)


# -------------------------------- wrapper ------------------------------------

def prepare_params(params):
    """One-time layout prep (hoisted out of the forward pass).

    PyTorch Conv1d weight (Cout, Cin, 3) -> stacked (Cout, 3*Cin) with rows
    ordered tap-major (tap k, then cin), matching the kernel's stacked RHS
    [x_prev; x; x_next]; bias -> (Cout, 1).
    """
    (w1, b1), (w2, b2) = params["conv1"], params["conv2"]

    def stack(w):  # (Cout, Cin, 3) -> (Cout, 3*Cin)
        return jnp.transpose(w, (0, 2, 1)).reshape(w.shape[0], -1)

    return (stack(w1), b1.reshape(-1, 1), stack(w2), b2.reshape(-1, 1))


def unet_encoder_forward(x, prep):
    """x: (N, Cin, L) in PyTorch NCL layout.  Returns (N, Cout, L)."""
    n, cin, L = x.shape
    w1, b1, w2, b2 = prep
    cout = w1.shape[0]

    # Lane-aligned padded length with at least one guaranteed zero pad lane.
    lp = ((L + 1 + 127) // 128) * 128

    # Block the batch: 2 blocks when n >= 2 (both v7x TCs busy; just 2 cheap
    # serial steps on v5e/v6e).  Grow block count only if the per-block
    # working set would exceed a conservative VMEM budget.
    per_sample_bytes = 4 * lp * (4 * cin + 5 * cout)   # x + rhs1 + h + rhs2 + out
    budget = 8 << 20
    min_blocks = 2 if n >= 2 else 1
    num_blocks = max(min_blocks, (n * per_sample_bytes + budget - 1) // budget)
    num_blocks = min(num_blocks, n)
    bt = (n + num_blocks - 1) // num_blocks            # samples per block
    n_pad = num_blocks * bt
    lanes = bt * lp

    xp = jnp.pad(x.astype(jnp.float32),
                 ((0, n_pad - n), (0, 0), (0, lp - L)))
    xp = xp.reshape(num_blocks, bt, cin, lp).transpose(0, 2, 1, 3)
    xp = xp.reshape(num_blocks, cin, lanes)

    # Per-sample valid-length mask, precomputed once (no iota in the kernel).
    mask = jnp.tile((jnp.arange(lp) < L).astype(jnp.float32), bt).reshape(1, lanes)

    out = pl.pallas_call(
        _unet_encoder_kernel,
        out_shape=jax.ShapeDtypeStruct((num_blocks, cout, lanes), jnp.float32),
        grid_spec=pltpu.PrefetchScalarGridSpec(
            num_scalar_prefetch=0,
            grid=(num_blocks,),
            in_specs=[pl.BlockSpec((1, cin, lanes), lambda i: (i, 0, 0)),
                      pl.BlockSpec((1, lanes), lambda i: (0, 0)),
                      pl.BlockSpec((cout, 3 * cin), lambda i: (0, 0)),
                      pl.BlockSpec((cout, 1), lambda i: (0, 0)),
                      pl.BlockSpec((cout, 3 * cout), lambda i: (0, 0)),
                      pl.BlockSpec((cout, 1), lambda i: (0, 0))],
            out_specs=pl.BlockSpec((1, cout, lanes), lambda i: (i, 0, 0))),
        compiler_params=pltpu.CompilerParams(dimension_semantics=("parallel",)),
    )(xp, mask, w1, b1, w2, b2)

    out = out.reshape(num_blocks, cout, bt, lp).transpose(0, 2, 1, 3)
    out = out.reshape(n_pad, cout, lp)
    return out[:n, :, :L]


# --------------------------- plain-JAX reference -----------------------------

def ref_forward(x, params):
    def conv(h, w, b):
        y = jax.lax.conv_general_dilated(
            h, w, window_strides=(1,), padding=((1, 1),),
            dimension_numbers=("NCH", "OIH", "NCH"),
            precision=jax.lax.Precision.HIGHEST)
        return y + b[None, :, None]

    h = jnp.maximum(conv(x, *params["conv1"]), 0.0)
    return jnp.maximum(conv(h, *params["conv2"]), 0.0)


# -------------------------------- parameters ---------------------------------

def init_params(key, in_channels, out_channels):
    def conv_p(k, cin, cout, ksz=3):
        k1, k2 = jax.random.split(k)
        bound = 1.0 / np.sqrt(cin * ksz)
        return (jax.random.uniform(k1, (cout, cin, ksz), jnp.float32, -bound, bound),
                jax.random.uniform(k2, (cout,), jnp.float32, -bound, bound))

    k1, k2 = jax.random.split(key)
    return {"conv1": conv_p(k1, in_channels, out_channels),
            "conv2": conv_p(k2, out_channels, out_channels)}


# ----------------------------------- main -------------------------------------

def _check(x, params, prep):
    out = jax.jit(unet_encoder_forward)(x, prep)
    jax.block_until_ready(out)
    ref = jax.jit(ref_forward)(x, params)
    jax.block_until_ready(ref)
    assert out.shape == ref.shape and out.dtype == jnp.float32
    err = float(jnp.max(jnp.abs(out - ref)))
    tol = 1e-3 * (float(jnp.max(jnp.abs(ref))) + 1.0)
    assert err <= tol, f"max abs err {err} > tol {tol}"


if __name__ == "__main__":
    key = jax.random.PRNGKey(0)
    pkey, xkey, xkey2 = jax.random.split(key, 3)

    batch, in_channels, out_channels, seq_len = 2, 4, 16, 300
    params = init_params(pkey, in_channels, out_channels)
    prep = prepare_params(params)                  # one-time layout prep

    # Primary config: even batch, L not a multiple of 128.
    x = jax.random.normal(xkey, (batch, in_channels, seq_len), jnp.float32)
    _check(x, params, prep)

    # Secondary config: odd batch (exercises batch padding) and L % 128 == 0
    # (exercises the Lp >= L+1 guarantee that replaced the roll-wrap masks).
    x2 = jax.random.normal(xkey2, (3, in_channels, 128), jnp.float32)
    _check(x2, params, prep)

    print("KERNEL_OK")
</pallas_src>

<mosaic_0001>
module attributes {stable_mosaic.version = 11 : i64} {
  func.func @_unet_encoder_kernel(%arg0: i32, %arg1: memref<1x4x384xf32, #tpu.memory_space<vmem>>, %arg2: memref<1x384xf32, #tpu.memory_space<vmem>>, %arg3: memref<16x12xf32, #tpu.memory_space<vmem>>, %arg4: memref<16x1xf32, #tpu.memory_space<vmem>>, %arg5: memref<16x48xf32, #tpu.memory_space<vmem>>, %arg6: memref<16x1xf32, #tpu.memory_space<vmem>>, %arg7: memref<1x16x384xf32, #tpu.memory_space<vmem>>) attributes {dimension_semantics = [#tpu.dimension_semantics<parallel>], iteration_bounds = array<i64: 2>, scalar_prefetch = 0 : i64, scratch_operands = 0 : i64, tpu.core_type = #tpu.core_type<tc>, window_params = [{transform_indices = @transform_0, window_bounds = array<i64: 1, 4, 384>}, {pipeline_mode = #tpu.pipeline_mode<synchronous>, transform_indices = @transform_1, window_bounds = array<i64: 1, 384>}, {pipeline_mode = #tpu.pipeline_mode<synchronous>, transform_indices = @transform_2, window_bounds = array<i64: 16, 12>}, {pipeline_mode = #tpu.pipeline_mode<synchronous>, transform_indices = @transform_3, window_bounds = array<i64: 16, 1>}, {pipeline_mode = #tpu.pipeline_mode<synchronous>, transform_indices = @transform_4, window_bounds = array<i64: 16, 48>}, {pipeline_mode = #tpu.pipeline_mode<synchronous>, transform_indices = @transform_5, window_bounds = array<i64: 16, 1>}, {transform_indices = @transform_6, window_bounds = array<i64: 1, 16, 384>}]} {
    %c0 = arith.constant 0 : index
    %c0_0 = arith.constant 0 : index
    %c0_1 = arith.constant 0 : index
    %0 = vector.load %arg1[%c0, %c0_0, %c0_1] : memref<1x4x384xf32, #tpu.memory_space<vmem>>, vector<1x4x384xf32>
    %1 = vector.shape_cast %0 : vector<1x4x384xf32> to vector<4x384xf32>
    %c0_2 = arith.constant 0 : index
    %c0_3 = arith.constant 0 : index
    %2 = vector.load %arg2[%c0_2, %c0_3] : memref<1x384xf32, #tpu.memory_space<vmem>>, vector<1x384xf32>
    %c1_i32 = arith.constant 1 : i32
    %3 = tpu.dynamic_rotate %1 by %c1_i32 dim 1 : vector<4x384xf32>, i32 -> vector<4x384xf32>
    %c383_i32 = arith.constant 383 : i32
    %4 = tpu.dynamic_rotate %1 by %c383_i32 dim 1 : vector<4x384xf32>, i32 -> vector<4x384xf32>
    %5 = tpu.concatenate %3, %1, %4 in 0 : vector<4x384xf32>, vector<4x384xf32>, vector<4x384xf32> -> vector<12x384xf32>
    %c0_4 = arith.constant 0 : index
    %c0_5 = arith.constant 0 : index
    %6 = vector.load %arg3[%c0_4, %c0_5] : memref<16x12xf32, #tpu.memory_space<vmem>>, vector<16x12xf32>
    %cst = arith.constant dense<0.000000e+00> : vector<16x384xf32>
    %7 = tpu.matmul %6, %5, %cst {dimension_numbers = #tpu.dot_dimension_numbers<[1], [0], [0], [1], [0, 0, 1, 1], [], []>} : vector<16x12xf32>, vector<12x384xf32>, vector<16x384xf32> -> vector<16x384xf32>
    %c0_6 = arith.constant 0 : index
    %c0_7 = arith.constant 0 : index
    %8 = vector.load %arg4[%c0_6, %c0_7] : memref<16x1xf32, #tpu.memory_space<vmem>>, vector<16x1xf32>
    %9 = vector.broadcast %8 : vector<16x1xf32> to vector<16x384xf32>
    %10 = arith.addf %7, %9 : vector<16x384xf32>
    %cst_8 = arith.constant 0.000000e+00 : f32
    %11 = vector.broadcast %cst_8 : f32 to vector<16x384xf32>
    %12 = arith.maximumf %10, %11 : vector<16x384xf32>
    %13 = vector.broadcast %2 : vector<1x384xf32> to vector<16x384xf32>
    %14 = arith.mulf %12, %13 : vector<16x384xf32>
    %c1_i32_9 = arith.constant 1 : i32
    %15 = tpu.dynamic_rotate %14 by %c1_i32_9 dim 1 : vector<16x384xf32>, i32 -> vector<16x384xf32>
    %c383_i32_10 = arith.constant 383 : i32
    %16 = tpu.dynamic_rotate %14 by %c383_i32_10 dim 1 : vector<16x384xf32>, i32 -> vector<16x384xf32>
    %17 = tpu.concatenate %15, %14, %16 in 0 : vector<16x384xf32>, vector<16x384xf32>, vector<16x384xf32> -> vector<48x384xf32>
    %c0_11 = arith.constant 0 : index
    %c0_12 = arith.constant 0 : index
    %18 = vector.load %arg5[%c0_11, %c0_12] : memref<16x48xf32, #tpu.memory_space<vmem>>, vector<16x48xf32>
    %cst_13 = arith.constant dense<0.000000e+00> : vector<16x384xf32>
    %19 = tpu.matmul %18, %17, %cst_13 {dimension_numbers = #tpu.dot_dimension_numbers<[1], [0], [0], [1], [0, 0, 1, 1], [], []>} : vector<16x48xf32>, vector<48x384xf32>, vector<16x384xf32> -> vector<16x384xf32>
    %c0_14 = arith.constant 0 : index
    %c0_15 = arith.constant 0 : index
    %20 = vector.load %arg6[%c0_14, %c0_15] : memref<16x1xf32, #tpu.memory_space<vmem>>, vector<16x1xf32>
    %21 = vector.broadcast %20 : vector<16x1xf32> to vector<16x384xf32>
    %22 = arith.addf %19, %21 : vector<16x384xf32>
    %cst_16 = arith.constant 0.000000e+00 : f32
    %23 = vector.broadcast %cst_16 : f32 to vector<16x384xf32>
    %24 = arith.maximumf %22, %23 : vector<16x384xf32>
    %c0_17 = arith.constant 0 : index
    %c0_18 = arith.constant 0 : index
    %c0_19 = arith.constant 0 : index
    %25 = vector.load %arg7[%c0_17, %c0_18, %c0_19] : memref<1x16x384xf32, #tpu.memory_space<vmem>>, vector<1x16x384xf32>
    %26 = vector.shape_cast %25 : vector<1x16x384xf32> to vector<16x384xf32>
    %27 = vector.shape_cast %24 : vector<16x384xf32> to vector<1x16x384xf32>
    tpu.vector_store %arg7[%c0_17, %c0_18, %c0_19], %27 {strides = array<i32>} : memref<1x16x384xf32, #tpu.memory_space<vmem>>, vector<1x16x384xf32>,
    return
  }
  func.func @transform_0(%arg0: i32) -> (i32, i32, i32) {
    %c0_i32 = arith.constant 0 : i32
    %c0_i32_0 = arith.constant 0 : i32
    %c0_i32_1 = arith.constant 0 : i32
    return %arg0, %c0_i32, %c0_i32_0 : i32, i32, i32
  }
  func.func @transform_1(%arg0: i32) -> (i32, i32) {
    %c0_i32 = arith.constant 0 : i32
    %c0_i32_0 = arith.constant 0 : i32
    %c0_i32_1 = arith.constant 0 : i32
    return %c0_i32, %c0_i32_0 : i32, i32
  }
  func.func @transform_2(%arg0: i32) -> (i32, i32) {
    %c0_i32 = arith.constant 0 : i32
    %c0_i32_0 = arith.constant 0 : i32
    %c0_i32_1 = arith.constant 0 : i32
    return %c0_i32, %c0_i32_0 : i32, i32
  }
  func.func @transform_3(%arg0: i32) -> (i32, i32) {
    %c0_i32 = arith.constant 0 : i32
    %c0_i32_0 = arith.constant 0 : i32
    %c0_i32_1 = arith.constant 0 : i32
    return %c0_i32, %c0_i32_0 : i32, i32
  }
  func.func @transform_4(%arg0: i32) -> (i32, i32) {
    %c0_i32 = arith.constant 0 : i32
    %c0_i32_0 = arith.constant 0 : i32
    %c0_i32_1 = arith.constant 0 : i32
    return %c0_i32, %c0_i32_0 : i32, i32
  }
  func.func @transform_5(%arg0: i32) -> (i32, i32) {
    %c0_i32 = arith.constant 0 : i32
    %c0_i32_0 = arith.constant 0 : i32
    %c0_i32_1 = arith.constant 0 : i32
    return %c0_i32, %c0_i32_0 : i32, i32
  }
  func.func @transform_6(%arg0: i32) -> (i32, i32, i32) {
    %c0_i32 = arith.constant 0 : i32
    %c0_i32_0 = arith.constant 0 : i32
    %c0_i32_1 = arith.constant 0 : i32
    return %arg0, %c0_i32, %c0_i32_0 : i32, i32, i32
  }
}

</mosaic_0001>

<llo_original>
// kernel: unet_encoder_forward.1
$region0: #{unet_encoder_forward.1}
  #allocation0 [shape = 'u32[]', space=smem, size = 0x4, offset = 0x4, fixed_abs, tag = 'smem constant byte address 0x4 - core index']
  #allocation1 [shape = 'u32[72,128]{1,0:T(1,128)}', space=vmem, size = 0x9000, scoped, tag = 'internal scratch']
  %s0 = inlined_call_operand.vmem [shape: f32[2,4,384], index: 0, kind: input, shape index: {}]
  %s1 = inlined_call_operand.vmem [shape: f32[1,384], index: 1, kind: input, shape index: {}]
  %s2 = inlined_call_operand.vmem [shape: f32[16,12], index: 2, kind: input, shape index: {}]
  %s3 = inlined_call_operand.vmem [shape: f32[16,1], index: 3, kind: input, shape index: {}]
  %s4 = inlined_call_operand.vmem [shape: f32[16,48], index: 4, kind: input, shape index: {}]
  %s5 = inlined_call_operand.vmem [shape: f32[16,1], index: 5, kind: input, shape index: {}]
  %s6 = inlined_call_operand.hbm [shape: f32[2,16,384], index: 6, kind: output, shape index: {}]
  %s7 = sld [smem:[#allocation0]]
  $region57: #{unet_encoder_forward.1} parent=0
    _
  %s9 = ssub.s32 1, %s7
  %s10 = scalar_select 0, %s9, %s7
  $region1: #{unet_encoder_forward.1} parent=0
    #allocation2 [shape = 'u8[49152]{0}', space=vmem, size = 0xc000, scoped, tag = 'output window, operand 0']
    #allocation3 [shape = 's32[2]{0}', space=sflag, size = 0x8, scoped, tag = 'scoped memory for unet_encoder_forward.1']
    %11 = vsyncpa [#allocation3], 0
    %s12 = scalar_lea.sflag [#allocation3], 1
    %13 = vsyncpa %s12, 0
    loop: start=0, step=1, limit=4
    $region2: #{unet_encoder_forward.1} parent=1 // loop_pre_header
      _
    $region3: #{unet_encoder_forward.1} parent=1 // loop_header
      %s15 = sphi 0, %s19
      %p16 = scmp.ge.s32.totalorder %s15, 4
      %s25 = sphi 0, %s27
      %s28 = sphi 0, %s25
      %s29 = sphi 0, %s28
      %s45 = sphi 0, %s29
      %s49 = sphi 0, %s49
      %s51 = sphi 0, %s49
      %s52 = sphi 0, %s51
      %s66 = sphi 0, %s52
      %s70 = sphi 0, %s70
      %s72 = sphi 0, %s70
      %s73 = sphi 0, %s72
      %s87 = sphi 0, %s73
      %s91 = sphi 0, %s91
      %s93 = sphi 0, %s91
      %s94 = sphi 0, %s93
      %s108 = sphi 0, %s94
      %s112 = sphi 0, %s112
      %s114 = sphi 0, %s112
      %s115 = sphi 0, %s114
      %s129 = sphi 0, %s115
      %s133 = sphi 0, %s133
      %s135 = sphi 0, %s133
      %s136 = sphi 0, %s135
      %s150 = sphi 0, %s136
      %s156 = sphi 0, %s158
      %s159 = sphi 0, %s156
      %s160 = sphi 0, %s159
      %s176 = sphi 0, %s160
    $region4: #{unet_encoder_forward.1} parent=1 // loop_header_branch
      %18 = sbr.rel (%p16) target = $region8
    $region5: #{unet_encoder_forward.1} parent=1 // loop_body
      %s20 = ssub.s32 %s15, 1
      %s21 = ssub.s32 %s15, 2
      %s22 = sadd.s32 %s15, 1
      %s23 = ssub.s32 %s15, %s22
      %p24 = scmp.eq.s32.totalorder %s23, 0
      %s26 = sadd.s32 %s25, 1
      %s27 = scalar_select %p24, %s25, %s26
      %p30 = pneg %p24
      %p31 = scmp.eq.s32.totalorder %s15, 1
      %p32 = por %p30, %p31
      %p33 = scmp.ne.s32.totalorder %s25, %s28
      %p34 = scmp.eq.s32.totalorder %s15, 0
      %p35 = por %p33, %p34
      %p36 = scmp.ne.s32.totalorder %s25, %s28
      %p37 = scmp.eq.s32.totalorder %s20, 1
      %p38 = por %p36, %p37
      %p39 = scmp.ne.s32.totalorder %s28, %s29
      %p40 = scmp.eq.s32.totalorder %s20, 0
      %p41 = por %p39, %p40
      %p42 = scmp.ne.s32.totalorder %s28, %s29
      %p43 = scmp.eq.s32.totalorder %s21, 1
      %p44 = por %p42, %p43
      %p46 = scmp.ne.s32.totalorder %s29, %s45
      %p47 = scmp.eq.s32.totalorder %s21, 0
      %p48 = por %p46, %p47
      %s50 = sadd.s32 %s49, 1
      %p53 = scmp.eq.s32.totalorder %s15, 1
      %p54 = scmp.ne.s32.totalorder %s49, %s51
      %p55 = scmp.eq.s32.totalorder %s15, 0
      %p56 = por %p54, %p55
      %p57 = scmp.ne.s32.totalorder %s49, %s51
      %p58 = scmp.eq.s32.totalorder %s20, 1
      %p59 = por %p57, %p58
      %p60 = scmp.ne.s32.totalorder %s51, %s52
      %p61 = scmp.eq.s32.totalorder %s20, 0
      %p62 = por %p60, %p61
      %p63 = scmp.ne.s32.totalorder %s51, %s52
      %p64 = scmp.eq.s32.totalorder %s21, 1
      %p65 = por %p63, %p64
      %p67 = scmp.ne.s32.totalorder %s52, %s66
      %p68 = scmp.eq.s32.totalorder %s21, 0
      %p69 = por %p67, %p68
      %s71 = sadd.s32 %s70, 1
      %p74 = scmp.eq.s32.totalorder %s15, 1
      %p75 = scmp.ne.s32.totalorder %s70, %s72
      %p76 = scmp.eq.s32.totalorder %s15, 0
      %p77 = por %p75, %p76
      %p78 = scmp.ne.s32.totalorder %s70, %s72
      %p79 = scmp.eq.s32.totalorder %s20, 1
      %p80 = por %p78, %p79
      %p81 = scmp.ne.s32.totalorder %s72, %s73
      %p82 = scmp.eq.s32.totalorder %s20, 0
      %p83 = por %p81, %p82
      %p84 = scmp.ne.s32.totalorder %s72, %s73
      %p85 = scmp.eq.s32.totalorder %s21, 1
      %p86 = por %p84, %p85
      %p88 = scmp.ne.s32.totalorder %s73, %s87
      %p89 = scmp.eq.s32.totalorder %s21, 0
      %p90 = por %p88, %p89
      %s92 = sadd.s32 %s91, 1
      %p95 = scmp.eq.s32.totalorder %s15, 1
      %p96 = scmp.ne.s32.totalorder %s91, %s93
      %p97 = scmp.eq.s32.totalorder %s15, 0
      %p98 = por %p96, %p97
      %p99 = scmp.ne.s32.totalorder %s91, %s93
      %p100 = scmp.eq.s32.totalorder %s20, 1
      %p101 = por %p99, %p100
      %p102 = scmp.ne.s32.totalorder %s93, %s94
      %p103 = scmp.eq.s32.totalorder %s20, 0
      %p104 = por %p102, %p103
      %p105 = scmp.ne.s32.totalorder %s93, %s94
      %p106 = scmp.eq.s32.totalorder %s21, 1
      %p107 = por %p105, %p106
      %p109 = scmp.ne.s32.totalorder %s94, %s108
      %p110 = scmp.eq.s32.totalorder %s21, 0
      %p111 = por %p109, %p110
      %s113 = sadd.s32 %s112, 1
      %p116 = scmp.eq.s32.totalorder %s15, 1
      %p117 = scmp.ne.s32.totalorder %s112, %s114
      %p118 = scmp.eq.s32.totalorder %s15, 0
      %p119 = por %p117, %p118
      %p120 = scmp.ne.s32.totalorder %s112, %s114
      %p121 = scmp.eq.s32.totalorder %s20, 1
      %p122 = por %p120, %p121
      %p123 = scmp.ne.s32.totalorder %s114, %s115
      %p124 = scmp.eq.s32.totalorder %s20, 0
      %p125 = por %p123, %p124
      %p126 = scmp.ne.s32.totalorder %s114, %s115
      %p127 = scmp.eq.s32.totalorder %s21, 1
      %p128 = por %p126, %p127
      %p130 = scmp.ne.s32.totalorder %s115, %s129
      %p131 = scmp.eq.s32.totalorder %s21, 0
      %p132 = por %p130, %p131
      %s134 = sadd.s32 %s133, 1
      %p137 = scmp.eq.s32.totalorder %s15, 1
      %p138 = scmp.ne.s32.totalorder %s133, %s135
      %p139 = scmp.eq.s32.totalorder %s15, 0
      %p140 = por %p138, %p139
      %p141 = scmp.ne.s32.totalorder %s133, %s135
      %p142 = scmp.eq.s32.totalorder %s20, 1
      %p143 = por %p141, %p142
      %p144 = scmp.ne.s32.totalorder %s135, %s136
      %p145 = scmp.eq.s32.totalorder %s20, 0
      %p146 = por %p144, %p145
      %p147 = scmp.ne.s32.totalorder %s135, %s136
      %p148 = scmp.eq.s32.totalorder %s21, 1
      %p149 = por %p147, %p148
      %p151 = scmp.ne.s32.totalorder %s136, %s150
      %p152 = scmp.eq.s32.totalorder %s21, 0
      %p153 = por %p151, %p152
      %s154 = ssub.s32 %s15, %s22
      %p155 = scmp.eq.s32.totalorder %s154, 0
      %s157 = sadd.s32 %s156, 1
      %s158 = scalar_select %p155, %s156, %s157
      %p161 = pneg %p155
      %p162 = scmp.eq.s32.totalorder %s15, 1
      %p163 = por %p161, %p162
      %p164 = scmp.ne.s32.totalorder %s156, %s159
      %p165 = scmp.eq.s32.totalorder %s15, 0
      %p166 = por %p164, %p165
      %p167 = scmp.ne.s32.totalorder %s156, %s159
      %p168 = scmp.eq.s32.totalorder %s20, 1
      %p169 = por %p167, %p168
      %p170 = scmp.ne.s32.totalorder %s159, %s160
      %p171 = scmp.eq.s32.totalorder %s20, 0
      %p172 = por %p170, %p171
      %p173 = scmp.ne.s32.totalorder %s159, %s160
      %p174 = scmp.eq.s32.totalorder %s21, 1
      %p175 = por %p173, %p174
      %p177 = scmp.ne.s32.totalorder %s160, %s176
      %p178 = scmp.eq.s32.totalorder %s21, 0
      %p179 = por %p177, %p178
      %p180 = scmp.le.s32.totalorder 1, %s15
      %p181 = scmp.lt.s32.totalorder %s15, 3
      %p182 = pnand %p180, %p181
      %p183 = pneg %p182
      // Predicated region
      $region9: #{unet_encoder_forward.1} parent=5 // pred_check
        _
      $region10: #{unet_encoder_forward.1} parent=5 // pred_check_branch
        %185 = sbr.rel (%p182) target = $region12
      $region11: #{unet_encoder_forward.1} parent=5 // pred_region
        %s186 = ssub.s32 %s15, 1
        // Predicated region
        $region13: #{unet_encoder_forward.1} parent=11 // pred_check
          %p187 = pneg %p62
        $region14: #{unet_encoder_forward.1} parent=11 // pred_check_branch
          %189 = sbr.rel (%p187) target = $region16
        $region15: #{unet_encoder_forward.1} parent=11 // pred_region
          _
        $region16: #{unet_encoder_forward.1} parent=11 // pred_fallthru
          _
        // Predicated region
        $region17: #{unet_encoder_forward.1} parent=11 // pred_check
          %p190 = pneg %p83
        $region18: #{unet_encoder_forward.1} parent=11 // pred_check_branch
          %192 = sbr.rel (%p190) target = $region20
        $region19: #{unet_encoder_forward.1} parent=11 // pred_region
          _
        $region20: #{unet_encoder_forward.1} parent=11 // pred_fallthru
          _
        // Predicated region
        $region21: #{unet_encoder_forward.1} parent=11 // pred_check
          %p193 = pneg %p104
        $region22: #{unet_encoder_forward.1} parent=11 // pred_check_branch
          %195 = sbr.rel (%p193) target = $region24
        $region23: #{unet_encoder_forward.1} parent=11 // pred_region
          _
        $region24: #{unet_encoder_forward.1} parent=11 // pred_fallthru
          _
        // Predicated region
        $region25: #{unet_encoder_forward.1} parent=11 // pred_check
          %p196 = pneg %p125
        $region26: #{unet_encoder_forward.1} parent=11 // pred_check_branch
          %198 = sbr.rel (%p196) target = $region28
        $region27: #{unet_encoder_forward.1} parent=11 // pred_region
          _
        $region28: #{unet_encoder_forward.1} parent=11 // pred_fallthru
          _
        // Predicated region
        $region29: #{unet_encoder_forward.1} parent=11 // pred_check
          %p199 = pneg %p146
        $region30: #{unet_encoder_forward.1} parent=11 // pred_check_branch
          %201 = sbr.rel (%p199) target = $region32
        $region31: #{unet_encoder_forward.1} parent=11 // pred_region
          _
        $region32: #{unet_encoder_forward.1} parent=11 // pred_fallthru
          _
      $region12: #{unet_encoder_forward.1} parent=5 // pred_fallthru
        _
      %p202 = scmp.lt.s32.totalorder %s15, 2
      // Predicated region
      $region33: #{unet_encoder_forward.1} parent=5 // pred_check
        %p203 = pneg %p202
      $region34: #{unet_encoder_forward.1} parent=5 // pred_check_branch
        %205 = sbr.rel (%p203) target = $region36
      $region35: #{unet_encoder_forward.1} parent=5 // pred_region
        // Predicated region
        $region37: #{unet_encoder_forward.1} parent=35 // pred_check
          %p206 = pneg %p35
        $region38: #{unet_encoder_forward.1} parent=35 // pred_check_branch
          %208 = sbr.rel (%p206) target = $region40
        $region39: #{unet_encoder_forward.1} parent=35 // pred_region
          %p209 = scmp.lt.s32.totalorder %s15, 1
          %s210 = scalar_select %p209, %s15, 1
          %s211 = smul.addr %s210, 3
          %s212 = smul.addr %s211, 4
          %s213 = scalar_lea.vmem %s0, %s212
        $region40: #{unet_encoder_forward.1} parent=35 // pred_fallthru
          _
      $region36: #{unet_encoder_forward.1} parent=5 // pred_fallthru
        _
      %p214 = scmp.le.s32.totalorder 1, %s15
      %p215 = scmp.lt.s32.totalorder %s15, 3
      %p216 = pnand %p214, %p215
      %p217 = pneg %p216
      // Predicated region
      $region41: #{unet_encoder_forward.1} parent=5 // pred_check
        _
      $region42: #{unet_encoder_forward.1} parent=5 // pred_check_branch
        %219 = sbr.rel (%p216) target = $region44
      $region43: #{unet_encoder_forward.1} parent=5 // pred_region
        %s220 = ssub.s32 %s15, 1
        %p221 = scmp.lt.s32.totalorder %s20, 1
        %s222 = scalar_select %p221, %s20, 1
        %s223 = smul.addr %s222, 3
        %s224 = smul.addr %s223, 4
        %s225 = scalar_lea.vmem %s0, %s224
        %p226 = pneg %p41
        %p227 = pneg %p38
        %p228 = pneg %p62
        %p229 = pneg %p59
        %p230 = pneg %p83
        %p231 = pneg %p80
        %p232 = pneg %p104
        %p233 = pneg %p101
        %p234 = pneg %p125
        %p235 = pneg %p122
        %p236 = pneg %p146
        %p237 = pneg %p143
        %p238 = pneg %p172
        %p239 = pneg %p169
        %s240 = sand.u32 %s159, 1
        %s241 = scalar_lea.sflag [#allocation3], %s240
        %s242 = sand.u32 %s159, 1
        %s243 = smul.addr %s242, 48
        %s244 = scalar_lea.vmem [#allocation2], %s243
        %p245 = scmp.lt.s32.totalorder %s20, 1
        %s246 = scalar_select %p245, %s20, 1
        %s247 = smul.addr %s246, 3
        %s248 = smul.addr %s247, 4
        %s249 = scalar_lea.vmem %s0, %s248
        %v250 = vld [vmem:[%s249] sm:$0xff]
        %v251 = vld [vmem:[%s249 + $0x8] sm:$0xf]
        %v252 = vld [vmem:[%s1] sm:$0x7]
        %255 = vst [vmem:[#allocation1] ss:$2 sm:$0xff] %v250
        %s256 = scalar_lea.vmem [#allocation1], 16
        %257 = vst [vmem:[%s256] ss:$2 sm:$0xff] %v251
        %v258 = vld.sshfl [vmem:[#allocation1] sm:$0xff pattern:$0x75316420]
        %v259 = vld.sshfl [vmem:[#allocation1 + $0x8] sm:$0xff pattern:$0x75316420]
        %v260 = vld.sshfl [vmem:[#allocation1 + $0x10] sm:$0xff pattern:$0x75316420]
        %264 = vrot.lane.b32.xlu0 %v258, 1
        %v265 = vpop.permute.xlu0 %264
        %266 = vrot.lane.b32.xlu0 %v259, 1
        %v267 = vpop.permute.xlu0 %266
        %268 = vrot.lane.b32.xlu0 %v260, 1
        %v269 = vpop.permute.xlu0 %268
        %v270 = vlaneseq
        %v271 = vand.u32 %v270, 127
        %vm272 = vcmp.lt.s32.totalorder %v271, 1
        %v273 = vsel %vm272, %v267, %v269
        %v274 = vsel %vm272, %v265, %v267
        %v275 = vsel %vm272, %v269, %v265
        %276 = vst [vmem:[#allocation1] ss:$2 sm:$0xff] %v250
        %s277 = scalar_lea.vmem [#allocation1], 16
        %278 = vst [vmem:[%s277] ss:$2 sm:$0xff] %v251
        %v279 = vld.sshfl [vmem:[#allocation1] sm:$0xff pattern:$0x75316420]
        %v280 = vld.sshfl [vmem:[#allocation1 + $0x8] sm:$0xff pattern:$0x75316420]
        %v281 = vld.sshfl [vmem:[#allocation1 + $0x10] sm:$0xff pattern:$0x75316420]
        %285 = vrot.lane.b32.xlu0 %v279, 127
        %v286 = vpop.permute.xlu0 %285
        %287 = vrot.lane.b32.xlu0 %v280, 127
        %v288 = vpop.permute.xlu0 %287
        %289 = vrot.lane.b32.xlu0 %v281, 127
        %v290 = vpop.permute.xlu0 %289
        %vm291 = vcmp.lt.s32.totalorder %v271, 127
        %v292 = vsel %vm291, %v288, %v290
        %v293 = vsel %vm291, %v286, %v288
        %v294 = vsel %vm291, %v290, %v286
        %s295 = scalar_lea.vmem [#allocation1], 1
        %296 = vst [vmem:[%s295] ss:$2 sm:$0xff] %v250
        %s297 = scalar_lea.vmem [#allocation1], 17
        %298 = vst [vmem:[%s297] ss:$2 sm:$0xff] %v251
        %v299 = vld.sshfl [vmem:[#allocation1] sm:$0xff pattern:$0x75316420]
        %v300 = vld.sshfl [vmem:[#allocation1 + $0x8] sm:$0xff pattern:$0x75316420]
        %v301 = vld.sshfl [vmem:[#allocation1 + $0x10] sm:$0xff pattern:$0x75316420]
        %vm305 = vcmask 1043456
        %v306 = vsel %vm305, %v275, %v299
        %v307 = vsel %vm305, %v274, %v300
        %v308 = vsel %vm305, %v273, %v301
        %v309 = vld [vmem:[%s2] sm:$0xff]
        %v310 = vld [vmem:[%s2 + $0x8] sm:$0xff]
        %v311 = vld [vmem:[%s3] sm:$0xff]
        %v312 = vld [vmem:[%s3 + $0x8] sm:$0xff]
        %314 = vset.pattern.permute.xlu0 0
        %315 = vperm.xlu0 %314, %v311
        %v316 = vpop.permute.xlu0 %315
        %319 = vset.pattern.permute.xlu0 0
        %320 = vperm.xlu0 %319, %v312
        %v321 = vpop.permute.xlu0 %320
        %vm323 = vcmask 97280
        %v325 = vsel %vm323, %v309, 0
        %v328 = vsel %vm323, %v310, 0
        %v331 = vsel %vm305, %v293, 0
        %v334 = vsel %vm305, %v292, 0
        %v337 = vsel %vm305, %v294, 0
        %339 = vmatpush.msra.mxu0 0.0
        %340 = vmatpush.msra.mxu0 0.0
        %341 = vmatpush.msra.mxu0 0.0
        %342 = vmatpush.msra.mxu0 0.0
        %343 = vmatpush.msra.mxu0 0.0
        %344 = vmatpush.msra.mxu0 0.0
        %345 = vmatpush.msra.mxu0 0.0
        %346 = vmatpush.msra.mxu0 0.0
        %347 = vmatpush.msra.mxu0 0.0
        %348 = vmatpush.msra.mxu0 0.0
        %349 = vmatpush.msra.mxu0 0.0
        %350 = vmatpush.msra.mxu0 0.0
        %351 = vmatpush.msra.mxu0 0.0
        %352 = vmatpush.msra.mxu0 0.0
        %353 = vmatpush.msra.mxu0 %v331
        %354 = vmatpush.msra.mxu0 %v306
        %355 = vmatmul.f32.gmra.mxu0 %v325
        %v356 = vpop.f32.mrf.mxu0
        %v357 = vadd.f32 %v316, %v356
        %358 = vmatmul.f32.gmra.mxu0 %v328
        %v359 = vpop.f32.mrf.mxu0
        %v360 = vadd.f32 %v321, %v359
        %361 = vdwg.mxu0
        %362 = vmatpush.msra.mxu0 0.0
        %363 = vmatpush.msra.mxu0 0.0
        %364 = vmatpush.msra.mxu0 0.0
        %365 = vmatpush.msra.mxu0 0.0
        %366 = vmatpush.msra.mxu0 0.0
        %367 = vmatpush.msra.mxu0 0.0
        %368 = vmatpush.msra.mxu0 0.0
        %369 = vmatpush.msra.mxu0 0.0
        %370 = vmatpush.msra.mxu0 0.0
        %371 = vmatpush.msra.mxu0 0.0
        %372 = vmatpush.msra.mxu0 0.0
        %373 = vmatpush.msra.mxu0 0.0
        %374 = vmatpush.msra.mxu0 0.0
        %375 = vmatpush.msra.mxu0 0.0
        %376 = vmatpush.msra.mxu0 %v334
        %377 = vmatpush.msra.mxu0 %v307
        %378 = vmatmul.f32.gmra.mxu0 %v325
        %v379 = vpop.f32.mrf.mxu0
        %v380 = vadd.f32 %v316, %v379
        %381 = vmatmul.f32.gmra.mxu0 %v328
        %v382 = vpop.f32.mrf.mxu0
        %v383 = vadd.f32 %v321, %v382
        %384 = vdwg.mxu0
        %385 = vmatpush.msra.mxu0 0.0
        %386 = vmatpush.msra.mxu0 0.0
        %387 = vmatpush.msra.mxu0 0.0
        %388 = vmatpush.msra.mxu0 0.0
        %389 = vmatpush.msra.mxu0 0.0
        %390 = vmatpush.msra.mxu0 0.0
        %391 = vmatpush.msra.mxu0 0.0
        %392 = vmatpush.msra.mxu0 0.0
        %393 = vmatpush.msra.mxu0 0.0
        %394 = vmatpush.msra.mxu0 0.0
        %395 = vmatpush.msra.mxu0 0.0
        %396 = vmatpush.msra.mxu0 0.0
        %397 = vmatpush.msra.mxu0 0.0
        %398 = vmatpush.msra.mxu0 0.0
        %399 = vmatpush.msra.mxu0 %v337
        %400 = vmatpush.msra.mxu0 %v308
        %401 = vmatmul.f32.gmra.mxu0 %v325
        %v402 = vpop.f32.mrf.mxu0
        %v403 = vadd.f32 %v316, %v402
        %404 = vmatmul.f32.gmra.mxu0 %v328
        %v405 = vpop.f32.mrf.mxu0
        %v406 = vadd.f32 %v321, %v405
        %407 = vdwg.mxu0
        %v408 = vmax.f32 %v357, 0.0
        %v409 = vmax.f32 %v380, 0.0
        %v410 = vmax.f32 %v403, 0.0
        %v411 = vmax.f32 %v360, 0.0
        %v412 = vmax.f32 %v383, 0.0
        %v413 = vmax.f32 %v406, 0.0
        %v415 = vperm.slane %v252, 0
        %v416 = vperm.slane %v252, 1
        %v417 = vperm.slane %v252, 2
        %v421 = vmul.f32 %v408, %v415
        %v422 = vmul.f32 %v409, %v416
        %v423 = vmul.f32 %v410, %v417
        %v424 = vmul.f32 %v411, %v415
        %v425 = vmul.f32 %v412, %v416
        %v426 = vmul.f32 %v413, %v417
        %427 = vrot.lane.b32.xlu0 %v421, 1
        %v428 = vpop.permute.xlu0 %427
        %429 = vrot.lane.b32.xlu0 %v424, 1
        %v430 = vpop.permute.xlu0 %429
        %431 = vrot.lane.b32.xlu0 %v422, 1
        %v432 = vpop.permute.xlu0 %431
        %433 = vrot.lane.b32.xlu0 %v425, 1
        %v434 = vpop.permute.xlu0 %433
        %435 = vrot.lane.b32.xlu0 %v423, 1
        %v436 = vpop.permute.xlu0 %435
        %437 = vrot.lane.b32.xlu0 %v426, 1
        %v438 = vpop.permute.xlu0 %437
        %v439 = vsel %vm272, %v432, %v436
        %v440 = vsel %vm272, %v434, %v438
        %v441 = vsel %vm272, %v428, %v432
        %v442 = vsel %vm272, %v430, %v434
        %v443 = vsel %vm272, %v436, %v428
        %v444 = vsel %vm272, %v438, %v430
        %445 = vrot.lane.b32.xlu0 %v421, 127
        %v446 = vpop.permute.xlu0 %445
        %447 = vrot.lane.b32.xlu0 %v424, 127
        %v448 = vpop.permute.xlu0 %447
        %449 = vrot.lane.b32.xlu0 %v422, 127
        %v450 = vpop.permute.xlu0 %449
        %451 = vrot.lane.b32.xlu0 %v425, 127
        %v452 = vpop.permute.xlu0 %451
        %453 = vrot.lane.b32.xlu0 %v423, 127
        %v454 = vpop.permute.xlu0 %453
        %455 = vrot.lane.b32.xlu0 %v426, 127
        %v456 = vpop.permute.xlu0 %455
        %v457 = vsel %vm291, %v450, %v454
        %v458 = vsel %vm291, %v452, %v456
        %v459 = vsel %vm291, %v446, %v450
        %v460 = vsel %vm291, %v448, %v452
        %v461 = vsel %vm291, %v454, %v446
        %v462 = vsel %vm291, %v456, %v448
        %v463 = vld [vmem:[%s4] sm:$0xff]
        %v464 = vld [vmem:[%s4 + $0x8] sm:$0xff]
        %v465 = vld [vmem:[%s5] sm:$0xff]
        %v466 = vld [vmem:[%s5 + $0x8] sm:$0xff]
        %468 = vset.pattern.permute.xlu0 0
        %469 = vperm.xlu0 %468, %v465
        %v470 = vpop.permute.xlu0 %469
        %473 = vset.pattern.permute.xlu0 0
        %474 = vperm.xlu0 %473, %v466
        %v475 = vpop.permute.xlu0 %474
        %vm477 = vcmask 392192
        %v479 = vsel %vm477, %v463, 0
        %v482 = vsel %vm477, %v464, 0
        %484 = vmatpush.msra.mxu0 0.0
        %485 = vmatpush.msra.mxu0 0.0
        %486 = vmatpush.msra.mxu0 0.0
        %487 = vmatpush.msra.mxu0 0.0
        %488 = vmatpush.msra.mxu0 0.0
        %489 = vmatpush.msra.mxu0 0.0
        %490 = vmatpush.msra.mxu0 0.0
        %491 = vmatpush.msra.mxu0 0.0
        %492 = vmatpush.msra.mxu0 0.0
        %493 = vmatpush.msra.mxu0 0.0
        %494 = vmatpush.msra.mxu0 %v460
        %495 = vmatpush.msra.mxu0 %v459
        %496 = vmatpush.msra.mxu0 %v424
        %497 = vmatpush.msra.mxu0 %v421
        %498 = vmatpush.msra.mxu0 %v444
        %499 = vmatpush.msra.mxu0 %v443
        %500 = vmatmul.f32.gmra.mxu0 %v479
        %v501 = vpop.f32.mrf.mxu0
        %v502 = vadd.f32 %v470, %v501
        %503 = vmatmul.f32.gmra.mxu0 %v482
        %v504 = vpop.f32.mrf.mxu0
        %v505 = vadd.f32 %v475, %v504
        %506 = vdwg.mxu0
        %507 = vmatpush.msra.mxu0 0.0
        %508 = vmatpush.msra.mxu0 0.0
        %509 = vmatpush.msra.mxu0 0.0
        %510 = vmatpush.msra.mxu0 0.0
        %511 = vmatpush.msra.mxu0 0.0
        %512 = vmatpush.msra.mxu0 0.0
        %513 = vmatpush.msra.mxu0 0.0
        %514 = vmatpush.msra.mxu0 0.0
        %515 = vmatpush.msra.mxu0 0.0
        %516 = vmatpush.msra.mxu0 0.0
        %517 = vmatpush.msra.mxu0 %v458
        %518 = vmatpush.msra.mxu0 %v457
        %519 = vmatpush.msra.mxu0 %v425
        %520 = vmatpush.msra.mxu0 %v422
        %521 = vmatpush.msra.mxu0 %v442
        %522 = vmatpush.msra.mxu0 %v441
        %523 = vmatmul.f32.gmra.mxu0 %v479
        %v524 = vpop.f32.mrf.mxu0
        %v525 = vadd.f32 %v470, %v524
        %526 = vmatmul.f32.gmra.mxu0 %v482
        %v527 = vpop.f32.mrf.mxu0
        %v528 = vadd.f32 %v475, %v527
        %529 = vdwg.mxu0
        %530 = vmatpush.msra.mxu0 0.0
        %531 = vmatpush.msra.mxu0 0.0
        %532 = vmatpush.msra.mxu0 0.0
        %533 = vmatpush.msra.mxu0 0.0
        %534 = vmatpush.msra.mxu0 0.0
        %535 = vmatpush.msra.mxu0 0.0
        %536 = vmatpush.msra.mxu0 0.0
        %537 = vmatpush.msra.mxu0 0.0
        %538 = vmatpush.msra.mxu0 0.0
        %539 = vmatpush.msra.mxu0 0.0
        %540 = vmatpush.msra.mxu0 %v462
        %541 = vmatpush.msra.mxu0 %v461
        %542 = vmatpush.msra.mxu0 %v426
        %543 = vmatpush.msra.mxu0 %v423
        %544 = vmatpush.msra.mxu0 %v440
        %545 = vmatpush.msra.mxu0 %v439
        %546 = vmatmul.f32.gmra.mxu0 %v479
        %v547 = vpop.f32.mrf.mxu0
        %v548 = vadd.f32 %v470, %v547
        %549 = vmatmul.f32.gmra.mxu0 %v482
        %v550 = vpop.f32.mrf.mxu0
        %v551 = vadd.f32 %v475, %v550
        %552 = vdwg.mxu0
        %v553 = vmax.f32 %v502, 0.0
        %v554 = vmax.f32 %v525, 0.0
        %v555 = vmax.f32 %v548, 0.0
        %v556 = vmax.f32 %v505, 0.0
        %v557 = vmax.f32 %v528, 0.0
        %v558 = vmax.f32 %v551, 0.0
        %559 = vst [vmem:[%s244] sm:$0xff] %v553
        %560 = vst [vmem:[%s244 + $0x8] sm:$0xff] %v554
        %561 = vst [vmem:[%s244 + $0x10] sm:$0xff] %v555
        %562 = vst [vmem:[%s244 + $0x18] sm:$0xff] %v556
        %563 = vst [vmem:[%s244 + $0x20] sm:$0xff] %v557
        %564 = vst [vmem:[%s244 + $0x28] sm:$0xff] %v558
        %s565 = sand.u32 %s159, 1
        %s566 = scalar_lea.sflag [#allocation3], %s565
        %s567 = sand.u32 %s159, 1
        %s568 = smul.addr %s567, 48
        %s569 = scalar_lea.vmem [#allocation2], %s568
        // Predicated region
        $region45: #{unet_encoder_forward.1} parent=43 // pred_check
          %p570 = pneg %p169
        $region46: #{unet_encoder_forward.1} parent=43 // pred_check_branch
          %572 = sbr.rel (%p570) target = $region48
        $region47: #{unet_encoder_forward.1} parent=43 // pred_region
          %574 = vsyncadd %s566, 0
          %s575 = smul.addr %s20, 6
          %s576 = smul.addr %s575, 8
          %s577 = scalar_lea.hbm %s6, %s576
          %s578 = sshll.u32 %s569, 4
          %s579 = int_to_ptr.vmem [resolvable:$true] %s578
          %s580 = sshll.u32 %s577, 4
          %s581 = int_to_ptr.hbm [resolvable:$true] %s580
          %586 = dma.vmem_to_hbm [thread:$0]  %s579, 768, %s581, %s566, 384, 384, 24
        $region48: #{unet_encoder_forward.1} parent=43 // pred_fallthru
          _
      $region44: #{unet_encoder_forward.1} parent=5 // pred_fallthru
        _
      %p587 = scmp.le.s32.totalorder 2, %s15
      // Predicated region
      $region49: #{unet_encoder_forward.1} parent=5 // pred_check
        %p588 = pneg %p587
      $region50: #{unet_encoder_forward.1} parent=5 // pred_check_branch
        %590 = sbr.rel (%p588) target = $region52
      $region51: #{unet_encoder_forward.1} parent=5 // pred_region
        %s591 = ssub.s32 %s15, 2
        // Predicated region
        $region53: #{unet_encoder_forward.1} parent=51 // pred_check
          %p592 = pneg %p175
        $region54: #{unet_encoder_forward.1} parent=51 // pred_check_branch
          %594 = sbr.rel (%p592) target = $region56
        $region55: #{unet_encoder_forward.1} parent=51 // pred_region
          %s595 = sand.u32 %s160, 1
          %s596 = scalar_lea.sflag [#allocation3], %s595
          %s597 = sand.u32 %s160, 1
          %s598 = smul.addr %s597, 48
          %s599 = scalar_lea.vmem [#allocation2], %s598
          %601 = dma.done %s596, 768
        $region56: #{unet_encoder_forward.1} parent=51 // pred_fallthru
          _
      $region52: #{unet_encoder_forward.1} parent=5 // pred_fallthru
        _
    $region6: #{unet_encoder_forward.1} parent=1 // loop_footer
      %s19 = sadd.s32 1, %s15
    $region7: #{unet_encoder_forward.1} parent=1 // loop_footer_branch
      %14 = sbr.rel target = $region3
    $region8: #{unet_encoder_forward.1} parent=1 // loop_exit
      _
    %602 = vsyncpa [#allocation3], 1
    %s603 = scalar_lea.sflag [#allocation3], 1
    %604 = vsyncpa %s603, 1

</llo_original>
